<compile_context>
chip_gen: v7x
topology: tpu7x:2x2x1
jax: 0.10.0
libtpu: 0.0.40
codegen_flags: <defaults>
</compile_context>

<pallas_src>
import functools
import math

import jax
import jax.numpy as jnp
from jax import lax
from jax.experimental import pallas as pl
from jax.experimental.pallas import tpu as pltpu


# ----------------------------------------------------------------------------
# Wrapper-side layout helpers (pure data movement; each fuses into the single
# XLA copy that NCHW <-> channels-last parity requires anyway).
# ----------------------------------------------------------------------------
def nchw_to_s2d_nhwc(x):
    """(B, C, H, W) -> (B, H//2, W//2, 4*C) space-to-depth.

    Channel order (v, q, c) where the original pixel is (h, w) = (2u+v, 2p+q).
    """
    B, C, H, W = x.shape
    x = x.reshape(B, C, H // 2, 2, W // 2, 2)       # (B, C, u, v, p, q)
    x = jnp.transpose(x, (0, 2, 4, 3, 5, 1))        # (B, u, p, v, q, C)
    return x.reshape(B, H // 2, W // 2, 4 * C)


def nchw_to_pool_view(x, fold):
    """(B, C, H, W) -> (B, Ho, Wo//fold, 4*fold*C) for the avg-pool kernel.

    Last-axis index = phase*(fold*C) + f*C + c with phase = v*2+q and the
    original pixel (h, w) = (2u+v, 2*(w2*fold+f)+q).  `fold` adjacent output
    columns share one lane-dense channel slab.
    """
    B, C, H, W = x.shape
    Ho, Wo = H // 2, W // 2
    Wf = Wo // fold
    x = x.reshape(B, C, Ho, 2, Wf, fold, 2)          # (B, C, u, v, w2, f, q)
    x = jnp.transpose(x, (0, 2, 4, 3, 6, 5, 1))      # (B, u, w2, v, q, f, C)
    return x.reshape(B, Ho, Wf, 4 * fold * C)


def pack_stride2_conv_weights(w_hwio):
    """HWIO (3, 3, Cin, Cout) -> (4, 4*Cin, Cout) taps for the space-to-depth
    formulation of the stride-2 conv:

        tap index = du*2 + dp            (du, dp in {0,1}: the 2x2 s2d taps)
        K index   = v*2*Cin + q*Cin + c  (matches nchw_to_s2d_nhwc channels)
        W2[du, dp, v, q] = W[2*du + v, 2*dp + q]   (zero where ky or kx == 3)
    """
    Cin, Cout = w_hwio.shape[2], w_hwio.shape[3]
    w4 = jnp.zeros((2, 2, 2, 2, Cin, Cout), w_hwio.dtype)
    for du in range(2):
        for v in range(2):
            ky = 2 * du + v
            if ky > 2:
                continue
            for dp in range(2):
                for q in range(2):
                    kx = 2 * dp + q
                    if kx > 2:
                        continue
                    w4 = w4.at[du, dp, v, q].set(w_hwio[ky, kx])
    return w4.reshape(4, 4 * Cin, Cout)


# ----------------------------------------------------------------------------
# Pallas kernels
# ----------------------------------------------------------------------------
def _downsample_conv_kernel(xa_ref, xb_ref, w_ref, b_ref, o_ref,
                            *, TH, Ho, Wo, C4, Cout, flat):
    """One (batch, output-row-strip) tile of the strided conv.

    flat=True : xa_ref (1, TH*Wo, C4), xb_ref (1, Wo, C4)      (no LHS reshape)
    flat=False: xa_ref (1, TH, Wo, C4), xb_ref (1, 1, Wo, C4)  (full-extent blocks)
    w_ref : (4, C4, Cout) packed 2x2 taps, K = 4*Cin
    b_ref : (1, Cout)  f32
    o_ref : (1, TH, Wo, Cout)

    The (0,1,0,1) zero padding is never materialised: the pad column appears
    as a zero column shifted into the partial outputs, the pad row via a
    masked halo contribution.
    """
    t = pl.program_id(1)
    M = TH * Wo

    if flat:
        xa2d = xa_ref[0]                       # (M, C4)  native dtype -> MXU
        xb2d = xb_ref[0]                       # (Wo, C4) halo row
    else:
        xa = xa_ref[0]                         # (TH, Wo, C4)
        if jnp.dtype(xa.dtype).itemsize < 4:
            # keep the (layout-proven) f32 reshape path for packed dtypes with
            # sublane-unaligned Wo; HBM reads stay in the narrow dtype.
            xa = xa.astype(jnp.float32)
        xa2d = xa.reshape(M, C4)
        xb2d = xb_ref[0, 0]                    # (Wo, C4)

    def mm(lhs, tap):
        return jnp.dot(lhs, w_ref[tap], preferred_element_type=jnp.float32)

    # Four taps on the SAME un-shifted LHS; bias folded into tap 0 (2-D add).
    p0 = (mm(xa2d, 0) + b_ref[...]).reshape(TH, Wo, Cout)
    p1 = mm(xa2d, 1).reshape(TH, Wo, Cout)

    # +1-row halo = s2d row (t+1)*TH: two small (Wo, C4) matmuls.  For the last
    # tile the halo is the synthetic bottom zero-pad row -> mask the partials.
    halo_valid = (t + 1) * TH < Ho
    hb2 = mm(xb2d, 2)                          # (Wo, Cout)
    hb3 = mm(xb2d, 3)
    hb2 = jnp.where(halo_valid, hb2, jnp.zeros_like(hb2))
    hb3 = jnp.where(halo_valid, hb3, jnp.zeros_like(hb3))

    # Row shift (+1 output row) applied to the Cout-wide partials.
    if TH > 1:
        p2 = mm(xa2d, 2).reshape(TH, Wo, Cout)
        p3 = mm(xa2d, 3).reshape(TH, Wo, Cout)
        up2 = jnp.concatenate([p2[1:], hb2.reshape(1, Wo, Cout)], axis=0)
        up3 = jnp.concatenate([p3[1:], hb3.reshape(1, Wo, Cout)], axis=0)
    else:
        up2 = hb2.reshape(1, Wo, Cout)
        up3 = hb3.reshape(1, Wo, Cout)

    # Column shift (+1 output col); rightmost column is the zero-pad column.
    left = p1 + up3
    zcol = jnp.zeros((TH, 1, Cout), jnp.float32)
    left_sh = jnp.concatenate([left[:, 1:, :], zcol], axis=1)

    acc = p0 + up2 + left_sh
    o_ref[0] = acc.astype(o_ref.dtype)


def _avg_pool_kernel(x_ref, o_ref, *, Cf):
    """2x2 / stride-2 average pool on the phase-major view: the four pooled
    pixels are four aligned lane slabs -> pure VPU adds, lane-dense store."""
    x = x_ref[0]                               # (TH, Wf, 4*Cf)
    s = (x[..., 0 * Cf:1 * Cf].astype(jnp.float32)
         + x[..., 1 * Cf:2 * Cf].astype(jnp.float32)
         + x[..., 2 * Cf:3 * Cf].astype(jnp.float32)
         + x[..., 3 * Cf:4 * Cf].astype(jnp.float32))
    o_ref[0] = (s * 0.25).astype(o_ref.dtype)


# ----------------------------------------------------------------------------
# Tiling / VMEM helpers (generation-aware)
# ----------------------------------------------------------------------------
def _vmem_budget_bytes():
    """~70% of physical VMEM (64 MiB/core on v7x, 128 MiB on v5e/v6e), capped."""
    cap = 64 << 20                     # conservative default (v7x per-core)
    try:
        info = pltpu.get_tpu_info()
        cap = int(getattr(info, "vmem_capacity_bytes", cap)) or cap
    except Exception:
        pass
    return max(min(int(0.70 * cap), 96 << 20), 40 << 20)


def _row_tile_from_target(Ho, target):
    th = max(1, min(int(target), Ho))
    while Ho % th:
        th -= 1
    return th


def _choose_row_tile(Ho, est_fn, block_bytes_fn, budget):
    # Largest divisor of Ho whose full VMEM estimate (pipeline buffers +
    # in-kernel working set) fits the budget, with per-block size capped so
    # double-buffering stays meaningful (smaller cap on 64 MiB parts).
    block_cap = (4 << 20) if budget < (64 << 20) else (12 << 20)
    best = 1
    for th in range(1, Ho + 1):
        if Ho % th == 0 and est_fn(th) <= budget and block_bytes_fn(th) <= block_cap:
            best = th
    return best


# ----------------------------------------------------------------------------
# Wrapper
# ----------------------------------------------------------------------------
def downsample(x_nchw, params=None, *, with_conv=True, row_tile=None,
               compute_dtype=jnp.bfloat16, nchw_output=True,
               input_buffer_count=None):
    """Forward pass of patch_vqgan.Downsample: (B, C, H, W) -> (B, C, H//2, W//2).

    nchw_output=False returns channels-last (skips the output back-transpose)
    for channels-last pipelines, avoiding one HBM round trip.
    """
    B, C, H, W = x_nchw.shape
    # TODO(synk): odd H/W would need a 1-row/col pre-pad to even; patch_vqgan
    # resolutions are even, so only even spatial sizes are supported here.
    assert H % 2 == 0 and W % 2 == 0, "even spatial sizes only"
    Ho, Wo = H // 2, W // 2
    out_dtype = x_nchw.dtype
    budget = _vmem_budget_bytes()

    if with_conv:
        w_hwio, bias = params
        Cout = w_hwio.shape[-1]
        C4 = 4 * C
        cdt = jnp.dtype(compute_dtype if compute_dtype is not None else x_nchw.dtype)
        in_b = cdt.itemsize
        out_b = jnp.dtype(out_dtype).itemsize

        # One XLA copy: NCHW -> channels-last space-to-depth (bf16 cast fused).
        xs = nchw_to_s2d_nhwc(x_nchw).astype(cdt)            # (B, Ho, Wo, 4C)
        w2 = pack_stride2_conv_weights(w_hwio).astype(cdt)   # (4, 4C, Cout)
        b2 = bias.reshape(1, Cout).astype(jnp.float32)

        # Flat (B, Ho*Wo, 4C) blocks need no in-kernel LHS reshape; requires
        # sublane-tile-aligned row counts (8 rows for f32, 16 for bf16).
        sub = 32 // in_b
        flat = (Wo % sub == 0)

        def est(th):
            xa = th * Wo * C4 * in_b
            halo = Wo * C4 * in_b
            ob = th * Wo * Cout * out_b
            wt = 4 * C4 * Cout * in_b + 4 * Cout
            # in-kernel f32 working set: partials/shifts/acc + possible f32 LHS
            work = 6 * th * Wo * Cout * 4 + 2 * Wo * Cout * 4 + th * Wo * C4 * 4
            return 2 * (xa + halo + ob + wt) + work + (4 << 20)

        if row_tile is None:
            TH = _choose_row_tile(Ho, est, lambda th: th * Wo * C4 * in_b, budget)
        else:
            TH = _row_tile_from_target(Ho, row_tile)
        nt = Ho // TH
        vmem = int(min(max(est(TH), 32 << 20), budget))

        xa_kwargs = {}
        if input_buffer_count is not None:      # optional deeper pipelining (v7x)
            xa_kwargs["pipeline_mode"] = pl.Buffered(int(input_buffer_count))

        if flat:
            xs_in = xs.reshape(B, Ho * Wo, C4)
            xa_spec = pl.BlockSpec((1, TH * Wo, C4),
                                   lambda bi, ti: (bi, ti, 0), **xa_kwargs)
            # +1-row halo: s2d row (ti+1)*TH (clamped; last tile's halo is the
            # synthetic zero-pad row, masked in-kernel).  Block height Wo along
            # the flat row axis, so the clamped row index is the block index.
            halo_spec = pl.BlockSpec(
                (1, Wo, C4),
                lambda bi, ti: (bi, jnp.minimum((ti + 1) * TH, Ho - 1), 0))
        else:
            xs_in = xs
            xa_spec = pl.BlockSpec((1, TH, Wo, C4),
                                   lambda bi, ti: (bi, ti, 0, 0), **xa_kwargs)
            halo_spec = pl.BlockSpec(
                (1, 1, Wo, C4),
                lambda bi, ti: (bi, jnp.minimum((ti + 1) * TH, Ho - 1), 0, 0))

        kern = functools.partial(_downsample_conv_kernel,
                                 TH=TH, Ho=Ho, Wo=Wo, C4=C4, Cout=Cout, flat=flat)
        out = pl.pallas_call(
            kern,
            out_shape=jax.ShapeDtypeStruct((B, Ho, Wo, Cout), out_dtype),
            grid=(B, nt),
            in_specs=[
                xa_spec,
                halo_spec,
                pl.BlockSpec((4, C4, Cout), lambda bi, ti: (0, 0, 0)),
                pl.BlockSpec((1, Cout), lambda bi, ti: (0, 0)),
            ],
            out_specs=pl.BlockSpec((1, TH, Wo, Cout), lambda bi, ti: (bi, ti, 0, 0)),
            compiler_params=pltpu.CompilerParams(
                dimension_semantics=("parallel", "parallel"),
                vmem_limit_bytes=vmem),
        )(xs_in, xs_in, w2, b2)

        if not nchw_output:
            return out                                       # (B, Ho, Wo, Cout)
        return jnp.transpose(out, (0, 3, 1, 2))              # back to NCHW

    # ---------------- with_conv=False: 2x2 / stride-2 average pool ----------
    fold = 128 // math.gcd(C, 128)        # make the lane axis a multiple of 128
    if fold > 1 and (Wo % fold != 0):
        fold = 1
    Wf = Wo // fold
    Cf = fold * C
    xs = nchw_to_pool_view(x_nchw, fold)                     # (B, Ho, Wf, 4*Cf)
    in_b = jnp.dtype(x_nchw.dtype).itemsize

    def est_pool(th):
        ib = th * Wf * 4 * Cf * in_b
        ob = th * Wf * Cf * in_b
        work = 5 * th * Wf * Cf * 4
        return 2 * (ib + ob) + work + (4 << 20)

    if row_tile is None:
        TH = _choose_row_tile(Ho, est_pool, lambda th: th * Wf * 4 * Cf * in_b, budget)
    else:
        TH = _row_tile_from_target(Ho, row_tile)
    nt = Ho // TH
    vmem = int(min(max(est_pool(TH), 32 << 20), budget))

    out = pl.pallas_call(
        functools.partial(_avg_pool_kernel, Cf=Cf),
        out_shape=jax.ShapeDtypeStruct((B, Ho, Wf, Cf), out_dtype),
        grid=(B, nt),
        in_specs=[pl.BlockSpec((1, TH, Wf, 4 * Cf), lambda bi, ti: (bi, ti, 0, 0))],
        out_specs=pl.BlockSpec((1, TH, Wf, Cf), lambda bi, ti: (bi, ti, 0, 0)),
        compiler_params=pltpu.CompilerParams(
            dimension_semantics=("parallel", "parallel"),
            vmem_limit_bytes=vmem),
    )(xs)

    out = out.reshape(B, Ho, Wf, fold, C)
    if not nchw_output:
        return out.reshape(B, Ho, Wo, C)                     # channels-last
    return jnp.transpose(out, (0, 4, 1, 2, 3)).reshape(B, C, Ho, Wo)


# ----------------------------------------------------------------------------
# Pure-JAX reference (mirrors the PyTorch module exactly)
# ----------------------------------------------------------------------------
def downsample_ref(x_nchw, w_hwio=None, bias=None, *, with_conv=True):
    if with_conv:
        xp = jnp.pad(x_nchw, ((0, 0), (0, 0), (0, 1), (0, 1)))
        out = lax.conv_general_dilated(
            xp, w_hwio, window_strides=(2, 2), padding="VALID",
            dimension_numbers=("NCHW", "HWIO", "NCHW"),
            precision=lax.Precision.HIGHEST)
        return out + bias[None, :, None, None]
    sums = lax.reduce_window(x_nchw, 0.0, lax.add,
                             (1, 1, 2, 2), (1, 1, 2, 2), "VALID")
    return sums * 0.25


# ----------------------------------------------------------------------------
# Demo
# ----------------------------------------------------------------------------
if __name__ == "__main__":
    key = jax.random.PRNGKey(0)
    kx, kw, kb = jax.random.split(key, 3)
    B, C, H, W = 2, 64, 16, 16
    x = jax.random.normal(kx, (B, C, H, W), dtype=jnp.float32)
    w = 0.05 * jax.random.normal(kw, (3, 3, C, C), dtype=jnp.float32)   # HWIO
    b = 0.05 * jax.random.normal(kb, (C,), dtype=jnp.float32)

    # f32 path with row_tile=4: two row strips -> exercises the real-halo AND
    # the zero-pad-halo branches plus the flat-LHS layout.
    down_conv_f32 = jax.jit(lambda x_, w_, b_: downsample(
        x_, (w_, b_), with_conv=True, row_tile=4, compute_dtype=jnp.float32))
    # default bf16 MXU path with adaptive tiling (4-D fallback layout here).
    down_conv_bf16 = jax.jit(lambda x_, w_, b_: downsample(
        x_, (w_, b_), with_conv=True, compute_dtype=jnp.bfloat16))
    down_pool = jax.jit(lambda x_: downsample(x_, None, with_conv=False))

    out_f32 = jax.block_until_ready(down_conv_f32(x, w, b))
    out_bf16 = jax.block_until_ready(down_conv_bf16(x, w, b))
    out_pool = jax.block_until_ready(down_pool(x))

    assert out_f32.shape == (B, C, H // 2, W // 2), out_f32.shape
    assert out_bf16.shape == (B, C, H // 2, W // 2), out_bf16.shape
    assert out_pool.shape == (B, C, H // 2, W // 2), out_pool.shape

    ref_conv = downsample_ref(x, w, b, with_conv=True)
    ref_pool = downsample_ref(x, with_conv=False)
    assert jnp.allclose(out_f32, ref_conv, atol=3e-3, rtol=3e-3)
    assert jnp.allclose(out_bf16, ref_conv, atol=5e-2, rtol=5e-2)
    assert jnp.allclose(out_pool, ref_pool, atol=1e-5, rtol=1e-5)

    print("KERNEL_OK")
</pallas_src>

<mosaic_0001>
module attributes {stable_mosaic.version = 11 : i64} {
  func.func @_downsample_conv_kernel(%arg0: i32, %arg1: i32, %arg2: memref<1x32x256xf32, #tpu.memory_space<vmem>>, %arg3: memref<1x8x256xf32, #tpu.memory_space<vmem>>, %arg4: memref<4x256x64xf32, #tpu.memory_space<vmem>>, %arg5: memref<1x64xf32, #tpu.memory_space<vmem>>, %arg6: memref<1x4x8x64xf32, #tpu.memory_space<vmem>>) attributes {dimension_semantics = [#tpu.dimension_semantics<parallel>, #tpu.dimension_semantics<parallel>], iteration_bounds = array<i64: 2, 2>, scalar_prefetch = 0 : i64, scratch_operands = 0 : i64, tpu.core_type = #tpu.core_type<tc>, window_params = [{transform_indices = @transform_0, window_bounds = array<i64: 1, 32, 256>}, {transform_indices = @transform_1, window_bounds = array<i64: 1, 8, 256>}, {pipeline_mode = #tpu.pipeline_mode<synchronous>, transform_indices = @transform_2, window_bounds = array<i64: 4, 256, 64>}, {pipeline_mode = #tpu.pipeline_mode<synchronous>, transform_indices = @transform_3, window_bounds = array<i64: 1, 64>}, {transform_indices = @transform_4, window_bounds = array<i64: 1, 4, 8, 64>}]} {
    %c0 = arith.constant 0 : index
    %c0_0 = arith.constant 0 : index
    %c0_1 = arith.constant 0 : index
    %0 = vector.load %arg2[%c0, %c0_0, %c0_1] : memref<1x32x256xf32, #tpu.memory_space<vmem>>, vector<1x32x256xf32>
    %1 = vector.shape_cast %0 : vector<1x32x256xf32> to vector<32x256xf32>
    %c0_2 = arith.constant 0 : index
    %c0_3 = arith.constant 0 : index
    %c0_4 = arith.constant 0 : index
    %2 = vector.load %arg3[%c0_2, %c0_3, %c0_4] : memref<1x8x256xf32, #tpu.memory_space<vmem>>, vector<1x8x256xf32>
    %3 = vector.shape_cast %2 : vector<1x8x256xf32> to vector<8x256xf32>
    %c0_5 = arith.constant 0 : index
    %c0_6 = arith.constant 0 : index
    %c0_7 = arith.constant 0 : index
    %4 = vector.load %arg4[%c0_5, %c0_6, %c0_7] : memref<4x256x64xf32, #tpu.memory_space<vmem>>, vector<1x256x64xf32>
    %5 = vector.shape_cast %4 : vector<1x256x64xf32> to vector<256x64xf32>
    %cst = arith.constant dense<0.000000e+00> : vector<32x64xf32>
    %6 = tpu.matmul %1, %5, %cst {dimension_numbers = #tpu.dot_dimension_numbers<[1], [0], [0], [1], [0, 0, 1, 1], [], []>} : vector<32x256xf32>, vector<256x64xf32>, vector<32x64xf32> -> vector<32x64xf32>
    %c0_8 = arith.constant 0 : index
    %c0_9 = arith.constant 0 : index
    %7 = vector.load %arg5[%c0_8, %c0_9] : memref<1x64xf32, #tpu.memory_space<vmem>>, vector<1x64xf32>
    %8 = vector.broadcast %7 : vector<1x64xf32> to vector<32x64xf32>
    %9 = arith.addf %6, %8 : vector<32x64xf32>
    %10 = vector.shape_cast %9 : vector<32x64xf32> to vector<4x8x64xf32>
    %c1 = arith.constant 1 : index
    %c0_10 = arith.constant 0 : index
    %c0_11 = arith.constant 0 : index
    %11 = vector.load %arg4[%c1, %c0_10, %c0_11] : memref<4x256x64xf32, #tpu.memory_space<vmem>>, vector<1x256x64xf32>
    %12 = vector.shape_cast %11 : vector<1x256x64xf32> to vector<256x64xf32>
    %cst_12 = arith.constant dense<0.000000e+00> : vector<32x64xf32>
    %13 = tpu.matmul %1, %12, %cst_12 {dimension_numbers = #tpu.dot_dimension_numbers<[1], [0], [0], [1], [0, 0, 1, 1], [], []>} : vector<32x256xf32>, vector<256x64xf32>, vector<32x64xf32> -> vector<32x64xf32>
    %14 = vector.shape_cast %13 : vector<32x64xf32> to vector<4x8x64xf32>
    %c1_i32 = arith.constant 1 : i32
    %15 = arith.addi %arg1, %c1_i32 : i32
    %c4_i32 = arith.constant 4 : i32
    %16 = arith.muli %15, %c4_i32 : i32
    %c8_i32 = arith.constant 8 : i32
    %17 = arith.cmpi slt, %16, %c8_i32 : i32
    %c2 = arith.constant 2 : index
    %c0_13 = arith.constant 0 : index
    %c0_14 = arith.constant 0 : index
    %18 = vector.load %arg4[%c2, %c0_13, %c0_14] : memref<4x256x64xf32, #tpu.memory_space<vmem>>, vector<1x256x64xf32>
    %19 = vector.shape_cast %18 : vector<1x256x64xf32> to vector<256x64xf32>
    %cst_15 = arith.constant dense<0.000000e+00> : vector<8x64xf32>
    %20 = tpu.matmul %3, %19, %cst_15 {dimension_numbers = #tpu.dot_dimension_numbers<[1], [0], [0], [1], [0, 0, 1, 1], [], []>} : vector<8x256xf32>, vector<256x64xf32>, vector<8x64xf32> -> vector<8x64xf32>
    %c3 = arith.constant 3 : index
    %c0_16 = arith.constant 0 : index
    %c0_17 = arith.constant 0 : index
    %21 = vector.load %arg4[%c3, %c0_16, %c0_17] : memref<4x256x64xf32, #tpu.memory_space<vmem>>, vector<1x256x64xf32>
    %22 = vector.shape_cast %21 : vector<1x256x64xf32> to vector<256x64xf32>
    %cst_18 = arith.constant dense<0.000000e+00> : vector<8x64xf32>
    %23 = tpu.matmul %3, %22, %cst_18 {dimension_numbers = #tpu.dot_dimension_numbers<[1], [0], [0], [1], [0, 0, 1, 1], [], []>} : vector<8x256xf32>, vector<256x64xf32>, vector<8x64xf32> -> vector<8x64xf32>
    %cst_19 = arith.constant 0.000000e+00 : f32
    %24 = vector.broadcast %cst_19 : f32 to vector<8x64xf32>
    %25 = arith.select %17, %20, %24 : vector<8x64xf32>
    %cst_20 = arith.constant 0.000000e+00 : f32
    %26 = vector.broadcast %cst_20 : f32 to vector<8x64xf32>
    %27 = arith.select %17, %23, %26 : vector<8x64xf32>
    %c2_21 = arith.constant 2 : index
    %c0_22 = arith.constant 0 : index
    %c0_23 = arith.constant 0 : index
    %28 = vector.load %arg4[%c2_21, %c0_22, %c0_23] : memref<4x256x64xf32, #tpu.memory_space<vmem>>, vector<1x256x64xf32>
    %29 = vector.shape_cast %28 : vector<1x256x64xf32> to vector<256x64xf32>
    %cst_24 = arith.constant dense<0.000000e+00> : vector<32x64xf32>
    %30 = tpu.matmul %1, %29, %cst_24 {dimension_numbers = #tpu.dot_dimension_numbers<[1], [0], [0], [1], [0, 0, 1, 1], [], []>} : vector<32x256xf32>, vector<256x64xf32>, vector<32x64xf32> -> vector<32x64xf32>
    %31 = vector.shape_cast %30 : vector<32x64xf32> to vector<4x8x64xf32>
    %c3_25 = arith.constant 3 : index
    %c0_26 = arith.constant 0 : index
    %c0_27 = arith.constant 0 : index
    %32 = vector.load %arg4[%c3_25, %c0_26, %c0_27] : memref<4x256x64xf32, #tpu.memory_space<vmem>>, vector<1x256x64xf32>
    %33 = vector.shape_cast %32 : vector<1x256x64xf32> to vector<256x64xf32>
    %cst_28 = arith.constant dense<0.000000e+00> : vector<32x64xf32>
    %34 = tpu.matmul %1, %33, %cst_28 {dimension_numbers = #tpu.dot_dimension_numbers<[1], [0], [0], [1], [0, 0, 1, 1], [], []>} : vector<32x256xf32>, vector<256x64xf32>, vector<32x64xf32> -> vector<32x64xf32>
    %35 = vector.shape_cast %34 : vector<32x64xf32> to vector<4x8x64xf32>
    %36 = vector.extract_strided_slice %31 {offsets = [1, 0, 0], sizes = [3, 8, 64], strides = [1, 1, 1]} : vector<4x8x64xf32> to vector<3x8x64xf32>
    %37 = vector.shape_cast %25 : vector<8x64xf32> to vector<1x8x64xf32>
    %38 = tpu.concatenate %36, %37 in 0 : vector<3x8x64xf32>, vector<1x8x64xf32> -> vector<4x8x64xf32>
    %39 = vector.extract_strided_slice %35 {offsets = [1, 0, 0], sizes = [3, 8, 64], strides = [1, 1, 1]} : vector<4x8x64xf32> to vector<3x8x64xf32>
    %40 = vector.shape_cast %27 : vector<8x64xf32> to vector<1x8x64xf32>
    %41 = tpu.concatenate %39, %40 in 0 : vector<3x8x64xf32>, vector<1x8x64xf32> -> vector<4x8x64xf32>
    %42 = arith.addf %14, %41 : vector<4x8x64xf32>
    %cst_29 = arith.constant 0.000000e+00 : f32
    %43 = vector.broadcast %cst_29 : f32 to vector<4x1x64xf32>
    %44 = vector.extract_strided_slice %42 {offsets = [0, 1, 0], sizes = [4, 7, 64], strides = [1, 1, 1]} : vector<4x8x64xf32> to vector<4x7x64xf32>
    %45 = tpu.concatenate %44, %43 in 1 : vector<4x7x64xf32>, vector<4x1x64xf32> -> vector<4x8x64xf32>
    %46 = arith.addf %10, %38 : vector<4x8x64xf32>
    %47 = arith.addf %46, %45 : vector<4x8x64xf32>
    %c0_30 = arith.constant 0 : index
    %c0_31 = arith.constant 0 : index
    %c0_32 = arith.constant 0 : index
    %c0_33 = arith.constant 0 : index
    %48 = vector.load %arg6[%c0_30, %c0_31, %c0_32, %c0_33] : memref<1x4x8x64xf32, #tpu.memory_space<vmem>>, vector<1x4x8x64xf32>
    %49 = vector.shape_cast %48 : vector<1x4x8x64xf32> to vector<4x8x64xf32>
    %50 = vector.shape_cast %47 : vector<4x8x64xf32> to vector<1x4x8x64xf32>
    tpu.vector_store %arg6[%c0_30, %c0_31, %c0_32, %c0_33], %50 {strides = array<i32>} : memref<1x4x8x64xf32, #tpu.memory_space<vmem>>, vector<1x4x8x64xf32>,
    return
  }
  func.func @transform_0(%arg0: i32, %arg1: i32) -> (i32, i32, i32) {
    %c0_i32 = arith.constant 0 : i32
    %c0_i32_0 = arith.constant 0 : i32
    return %arg0, %arg1, %c0_i32 : i32, i32, i32
  }
  func.func @transform_1(%arg0: i32, %arg1: i32) -> (i32, i32, i32) {
    %c1_i32 = arith.constant 1 : i32
    %0 = arith.addi %arg1, %c1_i32 : i32
    %c4_i32 = arith.constant 4 : i32
    %1 = arith.muli %0, %c4_i32 : i32
    %c7_i32 = arith.constant 7 : i32
    %2 = arith.minsi %1, %c7_i32 : i32
    %c0_i32 = arith.constant 0 : i32
    %c0_i32_0 = arith.constant 0 : i32
    return %arg0, %2, %c0_i32 : i32, i32, i32
  }
  func.func @transform_2(%arg0: i32, %arg1: i32) -> (i32, i32, i32) {
    %c0_i32 = arith.constant 0 : i32
    %c0_i32_0 = arith.constant 0 : i32
    %c0_i32_1 = arith.constant 0 : i32
    %c0_i32_2 = arith.constant 0 : i32
    return %c0_i32, %c0_i32_0, %c0_i32_1 : i32, i32, i32
  }
  func.func @transform_3(%arg0: i32, %arg1: i32) -> (i32, i32) {
    %c0_i32 = arith.constant 0 : i32
    %c0_i32_0 = arith.constant 0 : i32
    %c0_i32_1 = arith.constant 0 : i32
    return %c0_i32, %c0_i32_0 : i32, i32
  }
  func.func @transform_4(%arg0: i32, %arg1: i32) -> (i32, i32, i32, i32) {
    %c0_i32 = arith.constant 0 : i32
    %c0_i32_0 = arith.constant 0 : i32
    %c0_i32_1 = arith.constant 0 : i32
    return %arg0, %arg1, %c0_i32, %c0_i32_0 : i32, i32, i32, i32
  }
}

</mosaic_0001>

<llo_original>
// kernel: _lambda_.1
$region0: #{_lambda_.1}
  #allocation0 [shape = 'u32[]', space=smem, size = 0x4, offset = 0x4, fixed_abs, tag = 'smem constant byte address 0x4 - core index']
  #allocation1 [shape = 'u32[144,128]{1,0:T(1,128)}', space=vmem, size = 0x12000, scoped, tag = 'internal scratch']
  %s0 = inlined_call_operand.vmem [shape: f32[2,64,256], index: 0, kind: input, shape index: {}, may-alias: {0,1}]
  %s1 = inlined_call_operand.vmem [shape: f32[2,64,256], index: 1, kind: input, shape index: {}, may-alias: {0,1}]
  %s2 = inlined_call_operand.vmem [shape: f32[4,256,64], index: 2, kind: input, shape index: {}]
  %s3 = inlined_call_operand.vmem [shape: f32[1,64], index: 3, kind: input, shape index: {}]
  %s4 = inlined_call_operand.hbm [shape: f32[2,8,8,64], index: 4, kind: output, shape index: {}]
  %s5 = sld [smem:[#allocation0]]
  $region49: #{_lambda_.1} parent=0
    _
  %s7 = ssub.s32 1, %s5
  %s8 = scalar_select 0, %s7, %s5
  $region1: #{_lambda_.1} parent=0
    #allocation2 [shape = 'u8[32768]{0}', space=vmem, size = 0x8000, scoped, tag = 'output window, operand 0']
    #allocation3 [shape = 's32[2]{0}', space=sflag, size = 0x8, scoped, tag = 'scoped memory for _lambda_.1']
    %9 = vsyncpa [#allocation3], 0
    %s10 = scalar_lea.sflag [#allocation3], 1
    %11 = vsyncpa %s10, 0
    loop: start=0, step=1, limit=6
    $region2: #{_lambda_.1} parent=1 // loop_pre_header
      _
    $region3: #{_lambda_.1} parent=1 // loop_header
      %s13 = sphi 0, %s17
      %p14 = scmp.ge.s32.totalorder %s13, 6
      %s20 = sphi 0, %s32
      %s21 = sphi 0, %s28
      %s22 = sphi 0, %s20
      %s23 = sphi 0, %s21
      %s24 = sphi 0, %s22
      %s25 = sphi 0, %s23
      %s37 = sphi 0, %s39
      %s40 = sphi 0, %s37
      %s41 = sphi 0, %s40
      %s57 = sphi 0, %s41
      %s73 = sphi 0, %s75
      %s76 = sphi 0, %s73
      %s77 = sphi 0, %s76
      %s93 = sphi 0, %s77
      %s97 = sphi 0, %s97
      %s99 = sphi 0, %s97
      %s100 = sphi 0, %s99
      %s114 = sphi 0, %s100
      %s118 = sphi 0, %s118
      %s120 = sphi 0, %s118
      %s121 = sphi 0, %s120
      %s135 = sphi 0, %s121
      %s143 = sphi 0, %s145
      %s146 = sphi 0, %s143
      %s147 = sphi 0, %s146
      %s163 = sphi 0, %s147
    $region4: #{_lambda_.1} parent=1 // loop_header_branch
      %16 = sbr.rel (%p14) target = $region8
    $region5: #{_lambda_.1} parent=1 // loop_body
      %s18 = ssub.s32 %s13, 1
      %s19 = ssub.s32 %s13, 2
      %s26 = sadd.s32 1, %s21
      %p27 = scmp.ge.s32.totalorder %s26, 2
      %s28 = scalar_select %p27, 0, %s26
      %s29 = sadd.s32 1, %s20
      %s30 = scalar_select %p27, %s29, %s20
      %p31 = scmp.ge.s32.totalorder %s30, 2
      %s32 = scalar_select %p31, 0, %s30
      %s33 = ssub.s32 %s20, %s32
      %s34 = ssub.s32 %s21, %s28
      %s35 = sor.u32 %s33, %s34
      %p36 = scmp.eq.s32.totalorder %s35, 0
      %s38 = sadd.s32 %s37, 1
      %s39 = scalar_select %p36, %s37, %s38
      %p42 = pneg %p36
      %p43 = scmp.eq.s32.totalorder %s13, 3
      %p44 = por %p42, %p43
      %p45 = scmp.ne.s32.totalorder %s37, %s40
      %p46 = scmp.eq.s32.totalorder %s13, 0
      %p47 = por %p45, %p46
      %p48 = scmp.ne.s32.totalorder %s37, %s40
      %p49 = scmp.eq.s32.totalorder %s18, 3
      %p50 = por %p48, %p49
      %p51 = scmp.ne.s32.totalorder %s40, %s41
      %p52 = scmp.eq.s32.totalorder %s18, 0
      %p53 = por %p51, %p52
      %p54 = scmp.ne.s32.totalorder %s40, %s41
      %p55 = scmp.eq.s32.totalorder %s19, 3
      %p56 = por %p54, %p55
      %p58 = scmp.ne.s32.totalorder %s41, %s57
      %p59 = scmp.eq.s32.totalorder %s19, 0
      %p60 = por %p58, %p59
      %s61 = sadd.s32 %s21, 1
      %s62 = smul.u32 %s61, 4
      %p63 = scmp.lt.s32.totalorder %s62, 7
      %s64 = scalar_select %p63, %s62, 7
      %s65 = sadd.s32 %s28, 1
      %s66 = smul.u32 %s65, 4
      %p67 = scmp.lt.s32.totalorder %s66, 7
      %s68 = scalar_select %p67, %s66, 7
      %s69 = ssub.s32 %s20, %s32
      %s70 = ssub.s32 %s64, %s68
      %s71 = sor.u32 %s69, %s70
      %p72 = scmp.eq.s32.totalorder %s71, 0
      %s74 = sadd.s32 %s73, 1
      %s75 = scalar_select %p72, %s73, %s74
      %p78 = pneg %p72
      %p79 = scmp.eq.s32.totalorder %s13, 3
      %p80 = por %p78, %p79
      %p81 = scmp.ne.s32.totalorder %s73, %s76
      %p82 = scmp.eq.s32.totalorder %s13, 0
      %p83 = por %p81, %p82
      %p84 = scmp.ne.s32.totalorder %s73, %s76
      %p85 = scmp.eq.s32.totalorder %s18, 3
      %p86 = por %p84, %p85
      %p87 = scmp.ne.s32.totalorder %s76, %s77
      %p88 = scmp.eq.s32.totalorder %s18, 0
      %p89 = por %p87, %p88
      %p90 = scmp.ne.s32.totalorder %s76, %s77
      %p91 = scmp.eq.s32.totalorder %s19, 3
      %p92 = por %p90, %p91
      %p94 = scmp.ne.s32.totalorder %s77, %s93
      %p95 = scmp.eq.s32.totalorder %s19, 0
      %p96 = por %p94, %p95
      %s98 = sadd.s32 %s97, 1
      %p101 = scmp.eq.s32.totalorder %s13, 3
      %p102 = scmp.ne.s32.totalorder %s97, %s99
      %p103 = scmp.eq.s32.totalorder %s13, 0
      %p104 = por %p102, %p103
      %p105 = scmp.ne.s32.totalorder %s97, %s99
      %p106 = scmp.eq.s32.totalorder %s18, 3
      %p107 = por %p105, %p106
      %p108 = scmp.ne.s32.totalorder %s99, %s100
      %p109 = scmp.eq.s32.totalorder %s18, 0
      %p110 = por %p108, %p109
      %p111 = scmp.ne.s32.totalorder %s99, %s100
      %p112 = scmp.eq.s32.totalorder %s19, 3
      %p113 = por %p111, %p112
      %p115 = scmp.ne.s32.totalorder %s100, %s114
      %p116 = scmp.eq.s32.totalorder %s19, 0
      %p117 = por %p115, %p116
      %s119 = sadd.s32 %s118, 1
      %p122 = scmp.eq.s32.totalorder %s13, 3
      %p123 = scmp.ne.s32.totalorder %s118, %s120
      %p124 = scmp.eq.s32.totalorder %s13, 0
      %p125 = por %p123, %p124
      %p126 = scmp.ne.s32.totalorder %s118, %s120
      %p127 = scmp.eq.s32.totalorder %s18, 3
      %p128 = por %p126, %p127
      %p129 = scmp.ne.s32.totalorder %s120, %s121
      %p130 = scmp.eq.s32.totalorder %s18, 0
      %p131 = por %p129, %p130
      %p132 = scmp.ne.s32.totalorder %s120, %s121
      %p133 = scmp.eq.s32.totalorder %s19, 3
      %p134 = por %p132, %p133
      %p136 = scmp.ne.s32.totalorder %s121, %s135
      %p137 = scmp.eq.s32.totalorder %s19, 0
      %p138 = por %p136, %p137
      %s139 = ssub.s32 %s20, %s32
      %s140 = ssub.s32 %s21, %s28
      %s141 = sor.u32 %s139, %s140
      %p142 = scmp.eq.s32.totalorder %s141, 0
      %s144 = sadd.s32 %s143, 1
      %s145 = scalar_select %p142, %s143, %s144
      %p148 = pneg %p142
      %p149 = scmp.eq.s32.totalorder %s13, 3
      %p150 = por %p148, %p149
      %p151 = scmp.ne.s32.totalorder %s143, %s146
      %p152 = scmp.eq.s32.totalorder %s13, 0
      %p153 = por %p151, %p152
      %p154 = scmp.ne.s32.totalorder %s143, %s146
      %p155 = scmp.eq.s32.totalorder %s18, 3
      %p156 = por %p154, %p155
      %p157 = scmp.ne.s32.totalorder %s146, %s147
      %p158 = scmp.eq.s32.totalorder %s18, 0
      %p159 = por %p157, %p158
      %p160 = scmp.ne.s32.totalorder %s146, %s147
      %p161 = scmp.eq.s32.totalorder %s19, 3
      %p162 = por %p160, %p161
      %p164 = scmp.ne.s32.totalorder %s147, %s163
      %p165 = scmp.eq.s32.totalorder %s19, 0
      %p166 = por %p164, %p165
      %p167 = scmp.le.s32.totalorder 1, %s13
      %p168 = scmp.lt.s32.totalorder %s13, 5
      %p169 = pnand %p167, %p168
      %p170 = pneg %p169
      // Predicated region
      $region9: #{_lambda_.1} parent=5 // pred_check
        _
      $region10: #{_lambda_.1} parent=5 // pred_check_branch
        %172 = sbr.rel (%p169) target = $region12
      $region11: #{_lambda_.1} parent=5 // pred_region
        %s173 = ssub.s32 %s13, 1
        // Predicated region
        $region13: #{_lambda_.1} parent=11 // pred_check
          %p174 = pneg %p110
        $region14: #{_lambda_.1} parent=11 // pred_check_branch
          %176 = sbr.rel (%p174) target = $region16
        $region15: #{_lambda_.1} parent=11 // pred_region
          _
        $region16: #{_lambda_.1} parent=11 // pred_fallthru
          _
        // Predicated region
        $region17: #{_lambda_.1} parent=11 // pred_check
          %p177 = pneg %p131
        $region18: #{_lambda_.1} parent=11 // pred_check_branch
          %179 = sbr.rel (%p177) target = $region20
        $region19: #{_lambda_.1} parent=11 // pred_region
          _
        $region20: #{_lambda_.1} parent=11 // pred_fallthru
          _
      $region12: #{_lambda_.1} parent=5 // pred_fallthru
        _
      %p180 = scmp.lt.s32.totalorder %s13, 4
      // Predicated region
      $region21: #{_lambda_.1} parent=5 // pred_check
        %p181 = pneg %p180
      $region22: #{_lambda_.1} parent=5 // pred_check_branch
        %183 = sbr.rel (%p181) target = $region24
      $region23: #{_lambda_.1} parent=5 // pred_region
        // Predicated region
        $region25: #{_lambda_.1} parent=23 // pred_check
          %p184 = pneg %p47
        $region26: #{_lambda_.1} parent=23 // pred_check_branch
          %186 = sbr.rel (%p184) target = $region28
        $region27: #{_lambda_.1} parent=23 // pred_region
          %s187 = smul.u32 4, %s21
          %p188 = scmp.lt.s32.totalorder %s20, 1
          %s189 = scalar_select %p188, %s20, 1
          %p190 = scmp.lt.s32.totalorder %s187, 7
          %s191 = scalar_select %p190, %s187, 7
          %s192 = smul.addr %s191, 2
          %s193 = smul.addr %s189, 16
          %s194 = sadd.s32 %s192, %s193
          %s195 = smul.addr %s194, 8
          %s196 = scalar_lea.vmem %s0, %s195
          %s197 = smul.u32 4, %s21
        $region28: #{_lambda_.1} parent=23 // pred_fallthru
          _
        // Predicated region
        $region29: #{_lambda_.1} parent=23 // pred_check
          %p198 = pneg %p83
        $region30: #{_lambda_.1} parent=23 // pred_check_branch
          %200 = sbr.rel (%p198) target = $region32
        $region31: #{_lambda_.1} parent=23 // pred_region
          %s201 = sadd.s32 %s21, 1
          %s202 = smul.u32 %s201, 4
          %p203 = scmp.lt.s32.totalorder %s202, 7
          %s204 = scalar_select %p203, %s202, 7
          %p205 = scmp.lt.s32.totalorder %s20, 1
          %s206 = scalar_select %p205, %s20, 1
          %p207 = scmp.lt.s32.totalorder %s204, 7
          %s208 = scalar_select %p207, %s204, 7
          %s209 = smul.addr %s208, 2
          %s210 = smul.addr %s206, 16
          %s211 = sadd.s32 %s209, %s210
          %s212 = smul.addr %s211, 8
          %s213 = scalar_lea.vmem %s1, %s212
          %s214 = sadd.s32 %s21, 1
          %s215 = smul.u32 %s214, 4
          %p216 = scmp.lt.s32.totalorder %s215, 7
          %s217 = scalar_select %p216, %s215, 7
        $region32: #{_lambda_.1} parent=23 // pred_fallthru
          _
      $region24: #{_lambda_.1} parent=5 // pred_fallthru
        _
      %p218 = scmp.le.s32.totalorder 1, %s13
      %p219 = scmp.lt.s32.totalorder %s13, 5
      %p220 = pnand %p218, %p219
      %p221 = pneg %p220
      // Predicated region
      $region33: #{_lambda_.1} parent=5 // pred_check
        _
      $region34: #{_lambda_.1} parent=5 // pred_check_branch
        %223 = sbr.rel (%p220) target = $region36
      $region35: #{_lambda_.1} parent=5 // pred_region
        %s224 = ssub.s32 %s13, 1
        %s225 = smul.u32 4, %s23
        %p226 = scmp.lt.s32.totalorder %s22, 1
        %s227 = scalar_select %p226, %s22, 1
        %p228 = scmp.lt.s32.totalorder %s225, 7
        %s229 = scalar_select %p228, %s225, 7
        %s230 = smul.addr %s229, 2
        %s231 = smul.addr %s227, 16
        %s232 = sadd.s32 %s230, %s231
        %s233 = smul.addr %s232, 8
        %s234 = scalar_lea.vmem %s0, %s233
        %p235 = pneg %p53
        %p236 = pneg %p50
        %s237 = sadd.s32 %s23, 1
        %s238 = smul.u32 %s237, 4
        %p239 = scmp.lt.s32.totalorder %s238, 7
        %s240 = scalar_select %p239, %s238, 7
        %p241 = scmp.lt.s32.totalorder %s22, 1
        %s242 = scalar_select %p241, %s22, 1
        %p243 = scmp.lt.s32.totalorder %s240, 7
        %s244 = scalar_select %p243, %s240, 7
        %s245 = smul.addr %s244, 2
        %s246 = smul.addr %s242, 16
        %s247 = sadd.s32 %s245, %s246
        %s248 = smul.addr %s247, 8
        %s249 = scalar_lea.vmem %s1, %s248
        %p250 = pneg %p89
        %p251 = pneg %p86
        %p252 = pneg %p110
        %p253 = pneg %p107
        %p254 = pneg %p131
        %p255 = pneg %p128
        %p256 = pneg %p159
        %p257 = pneg %p156
        %s258 = sand.u32 %s146, 1
        %s259 = scalar_lea.sflag [#allocation3], %s258
        %s260 = sand.u32 %s146, 1
        %s261 = smul.addr %s260, 32
        %s262 = scalar_lea.vmem [#allocation2], %s261
        %s263 = smul.u32 4, %s23
        %p264 = scmp.lt.s32.totalorder %s22, 1
        %s265 = scalar_select %p264, %s22, 1
        %p266 = scmp.lt.s32.totalorder %s263, 7
        %s267 = scalar_select %p266, %s263, 7
        %s268 = smul.addr %s267, 2
        %s269 = smul.addr %s265, 16
        %s270 = sadd.s32 %s268, %s269
        %s271 = smul.addr %s270, 8
        %s272 = scalar_lea.vmem %s0, %s271
        %s273 = smul.u32 4, %s23
        %s274 = sadd.s32 %s23, 1
        %s275 = smul.u32 %s274, 4
        %p276 = scmp.lt.s32.totalorder %s275, 7
        %s277 = scalar_select %p276, %s275, 7
        %p278 = scmp.lt.s32.totalorder %s22, 1
        %s279 = scalar_select %p278, %s22, 1
        %p280 = scmp.lt.s32.totalorder %s277, 7
        %s281 = scalar_select %p280, %s277, 7
        %s282 = smul.addr %s281, 2
        %s283 = smul.addr %s279, 16
        %s284 = sadd.s32 %s282, %s283
        %s285 = smul.addr %s284, 8
        %s286 = scalar_lea.vmem %s1, %s285
        %s287 = sadd.s32 %s23, 1
        %s288 = smul.u32 %s287, 4
        %p289 = scmp.lt.s32.totalorder %s288, 7
        %s290 = scalar_select %p289, %s288, 7
        %s291 = smul.u32 4, %s23
        %v292 = vld [vmem:[%s272] sm:$0xff]
        %v293 = vld [vmem:[%s272 + $0x8] sm:$0xff]
        %v294 = vld [vmem:[%s272 + $0x10] sm:$0xff]
        %v295 = vld [vmem:[%s272 + $0x18] sm:$0xff]
        %v296 = vld [vmem:[%s272 + $0x20] sm:$0xff]
        %v297 = vld [vmem:[%s272 + $0x28] sm:$0xff]
        %v298 = vld [vmem:[%s272 + $0x30] sm:$0xff]
        %v299 = vld [vmem:[%s272 + $0x38] sm:$0xff]
        %v300 = vld [vmem:[%s286] sm:$0xff]
        %v301 = vld [vmem:[%s286 + $0x8] sm:$0xff]
        %v302 = vld [vmem:[%s2] sm:$0xff]
        %v303 = vld [vmem:[%s2 + $0x8] sm:$0xff]
        %v304 = vld [vmem:[%s2 + $0x10] sm:$0xff]
        %v305 = vld [vmem:[%s2 + $0x18] sm:$0xff]
        %v306 = vld [vmem:[%s2 + $0x20] sm:$0xff]
        %v307 = vld [vmem:[%s2 + $0x28] sm:$0xff]
        %v308 = vld [vmem:[%s2 + $0x30] sm:$0xff]
        %v309 = vld [vmem:[%s2 + $0x38] sm:$0xff]
        %v310 = vld [vmem:[%s2 + $0x40] sm:$0xff]
        %v311 = vld [vmem:[%s2 + $0x48] sm:$0xff]
        %v312 = vld [vmem:[%s2 + $0x50] sm:$0xff]
        %v313 = vld [vmem:[%s2 + $0x58] sm:$0xff]
        %v314 = vld [vmem:[%s2 + $0x60] sm:$0xff]
        %v315 = vld [vmem:[%s2 + $0x68] sm:$0xff]
        %v316 = vld [vmem:[%s2 + $0x70] sm:$0xff]
        %v317 = vld [vmem:[%s2 + $0x78] sm:$0xff]
        %v318 = vld [vmem:[%s2 + $0x80] sm:$0xff]
        %v319 = vld [vmem:[%s2 + $0x88] sm:$0xff]
        %v320 = vld [vmem:[%s2 + $0x90] sm:$0xff]
        %v321 = vld [vmem:[%s2 + $0x98] sm:$0xff]
        %v322 = vld [vmem:[%s2 + $0xa0] sm:$0xff]
        %v323 = vld [vmem:[%s2 + $0xa8] sm:$0xff]
        %v324 = vld [vmem:[%s2 + $0xb0] sm:$0xff]
        %v325 = vld [vmem:[%s2 + $0xb8] sm:$0xff]
        %v326 = vld [vmem:[%s2 + $0xc0] sm:$0xff]
        %v327 = vld [vmem:[%s2 + $0xc8] sm:$0xff]
        %v328 = vld [vmem:[%s2 + $0xd0] sm:$0xff]
        %v329 = vld [vmem:[%s2 + $0xd8] sm:$0xff]
        %v330 = vld [vmem:[%s2 + $0xe0] sm:$0xff]
        %v331 = vld [vmem:[%s2 + $0xe8] sm:$0xff]
        %v332 = vld [vmem:[%s2 + $0xf0] sm:$0xff]
        %v333 = vld [vmem:[%s2 + $0xf8] sm:$0xff]
        %v334 = vld [vmem:[%s3] sm:$0x1]
        %v336 = vlaneseq
        %v337 = vshrl.u32 %v336, 7
        %v338 = vsub.s32 0, %v337
        %v339 = vrot.slane %v334, %v338
        %341 = vmatprep.subr.mxu0 0.0
        %342 = vmatpush1.msra.mxu0 %v302
        %343 = vmatprep.subr.mxu0 0.0
        %344 = vmatpush1.msra.mxu0 %v303
        %345 = vmatprep.subr.mxu0 0.0
        %346 = vmatpush1.msra.mxu0 %v304
        %347 = vmatprep.subr.mxu0 0.0
        %348 = vmatpush1.msra.mxu0 %v305
        %349 = vmatprep.subr.mxu0 0.0
        %350 = vmatpush1.msra.mxu0 %v306
        %351 = vmatprep.subr.mxu0 0.0
        %352 = vmatpush1.msra.mxu0 %v307
        %353 = vmatprep.subr.mxu0 0.0
        %354 = vmatpush1.msra.mxu0 %v308
        %355 = vmatprep.subr.mxu0 0.0
        %356 = vmatpush1.msra.mxu0 %v309
        %357 = vmatprep.subr.mxu0 0.0
        %358 = vmatpush1.msra.mxu0 %v310
        %359 = vmatprep.subr.mxu0 0.0
        %360 = vmatpush1.msra.mxu0 %v311
        %361 = vmatprep.subr.mxu0 0.0
        %362 = vmatpush1.msra.mxu0 %v312
        %363 = vmatprep.subr.mxu0 0.0
        %364 = vmatpush1.msra.mxu0 %v313
        %365 = vmatprep.subr.mxu0 0.0
        %366 = vmatpush1.msra.mxu0 %v314
        %367 = vmatprep.subr.mxu0 0.0
        %368 = vmatpush1.msra.mxu0 %v315
        %369 = vmatprep.subr.mxu0 0.0
        %370 = vmatpush1.msra.mxu0 %v316
        %371 = vmatprep.subr.mxu0 0.0
        %372 = vmatpush1.msra.mxu0 %v317
        %373 = vmatprep.subr.mxu0 0.0
        %374 = vmatpush1.msra.mxu0 %v318
        %375 = vmatprep.subr.mxu0 0.0
        %376 = vmatpush1.msra.mxu0 %v319
        %377 = vmatprep.subr.mxu0 0.0
        %378 = vmatpush1.msra.mxu0 %v320
        %379 = vmatprep.subr.mxu0 0.0
        %380 = vmatpush1.msra.mxu0 %v321
        %381 = vmatprep.subr.mxu0 0.0
        %382 = vmatpush1.msra.mxu0 %v322
        %383 = vmatprep.subr.mxu0 0.0
        %384 = vmatpush1.msra.mxu0 %v323
        %385 = vmatprep.subr.mxu0 0.0
        %386 = vmatpush1.msra.mxu0 %v324
        %387 = vmatprep.subr.mxu0 0.0
        %388 = vmatpush1.msra.mxu0 %v325
        %389 = vmatprep.subr.mxu0 0.0
        %390 = vmatpush1.msra.mxu0 %v326
        %391 = vmatprep.subr.mxu0 0.0
        %392 = vmatpush1.msra.mxu0 %v327
        %393 = vmatprep.subr.mxu0 0.0
        %394 = vmatpush1.msra.mxu0 %v328
        %395 = vmatprep.subr.mxu0 0.0
        %396 = vmatpush1.msra.mxu0 %v329
        %397 = vmatprep.subr.mxu0 0.0
        %398 = vmatpush1.msra.mxu0 %v330
        %399 = vmatprep.subr.mxu0 0.0
        %400 = vmatpush1.msra.mxu0 %v331
        %401 = vmatprep.subr.mxu0 0.0
        %402 = vmatpush1.msra.mxu0 %v332
        %403 = vmatprep.subr.mxu0 0.0
        %404 = vmatpush1.msra.mxu0 %v333
        %405 = vmatprep.mubr.f32.mxu0 %v293
        %406 = vmatmul.mubr.f32.gmra.mrb[0].mxu0 %v292
        %v407 = vpop.f32.mrb[0].mxu0
        %v408 = vadd.f32 %v339, %v407
        %v409 = vpop.f32.mrb[0].mxu0
        %410 = vmatprep.mubr.f32.mxu0 %v295
        %411 = vmatmul.mubr.f32.gmra.mrb[0].mxu0 %v294
        %v412 = vpop.f32.mrb[0].mxu0
        %v413 = vadd.f32 %v339, %v412
        %v414 = vpop.f32.mrb[0].mxu0
        %415 = vmatprep.mubr.f32.mxu0 %v297
        %416 = vmatmul.mubr.f32.gmra.mrb[0].mxu0 %v296
        %v417 = vpop.f32.mrb[0].mxu0
        %v418 = vadd.f32 %v339, %v417
        %v419 = vpop.f32.mrb[0].mxu0
        %420 = vmatprep.mubr.f32.mxu0 %v299
        %421 = vmatmul.mubr.f32.gmra.mrb[0].mxu0 %v298
        %v422 = vpop.f32.mrb[0].mxu0
        %v423 = vadd.f32 %v339, %v422
        %v424 = vpop.f32.mrb[0].mxu0
        %425 = vdwg.mxu0
        %s426 = scalar_lea.vmem %s2, 256
        %v427 = vld [vmem:[%s426] sm:$0xff]
        %v428 = vld [vmem:[%s426 + $0x8] sm:$0xff]
        %v429 = vld [vmem:[%s426 + $0x10] sm:$0xff]
        %v430 = vld [vmem:[%s426 + $0x18] sm:$0xff]
        %v431 = vld [vmem:[%s426 + $0x20] sm:$0xff]
        %v432 = vld [vmem:[%s426 + $0x28] sm:$0xff]
        %v433 = vld [vmem:[%s426 + $0x30] sm:$0xff]
        %v434 = vld [vmem:[%s426 + $0x38] sm:$0xff]
        %v435 = vld [vmem:[%s426 + $0x40] sm:$0xff]
        %v436 = vld [vmem:[%s426 + $0x48] sm:$0xff]
        %v437 = vld [vmem:[%s426 + $0x50] sm:$0xff]
        %v438 = vld [vmem:[%s426 + $0x58] sm:$0xff]
        %v439 = vld [vmem:[%s426 + $0x60] sm:$0xff]
        %v440 = vld [vmem:[%s426 + $0x68] sm:$0xff]
        %v441 = vld [vmem:[%s426 + $0x70] sm:$0xff]
        %v442 = vld [vmem:[%s426 + $0x78] sm:$0xff]
        %v443 = vld [vmem:[%s426 + $0x80] sm:$0xff]
        %v444 = vld [vmem:[%s426 + $0x88] sm:$0xff]
        %v445 = vld [vmem:[%s426 + $0x90] sm:$0xff]
        %v446 = vld [vmem:[%s426 + $0x98] sm:$0xff]
        %v447 = vld [vmem:[%s426 + $0xa0] sm:$0xff]
        %v448 = vld [vmem:[%s426 + $0xa8] sm:$0xff]
        %v449 = vld [vmem:[%s426 + $0xb0] sm:$0xff]
        %v450 = vld [vmem:[%s426 + $0xb8] sm:$0xff]
        %v451 = vld [vmem:[%s426 + $0xc0] sm:$0xff]
        %v452 = vld [vmem:[%s426 + $0xc8] sm:$0xff]
        %v453 = vld [vmem:[%s426 + $0xd0] sm:$0xff]
        %v454 = vld [vmem:[%s426 + $0xd8] sm:$0xff]
        %v455 = vld [vmem:[%s426 + $0xe0] sm:$0xff]
        %v456 = vld [vmem:[%s426 + $0xe8] sm:$0xff]
        %v457 = vld [vmem:[%s426 + $0xf0] sm:$0xff]
        %v458 = vld [vmem:[%s426 + $0xf8] sm:$0xff]
        %459 = vmatprep.subr.mxu0 0.0
        %460 = vmatpush1.msra.mxu0 %v427
        %461 = vmatprep.subr.mxu0 0.0
        %462 = vmatpush1.msra.mxu0 %v428
        %463 = vmatprep.subr.mxu0 0.0
        %464 = vmatpush1.msra.mxu0 %v429
        %465 = vmatprep.subr.mxu0 0.0
        %466 = vmatpush1.msra.mxu0 %v430
        %467 = vmatprep.subr.mxu0 0.0
        %468 = vmatpush1.msra.mxu0 %v431
        %469 = vmatprep.subr.mxu0 0.0
        %470 = vmatpush1.msra.mxu0 %v432
        %471 = vmatprep.subr.mxu0 0.0
        %472 = vmatpush1.msra.mxu0 %v433
        %473 = vmatprep.subr.mxu0 0.0
        %474 = vmatpush1.msra.mxu0 %v434
        %475 = vmatprep.subr.mxu0 0.0
        %476 = vmatpush1.msra.mxu0 %v435
        %477 = vmatprep.subr.mxu0 0.0
        %478 = vmatpush1.msra.mxu0 %v436
        %479 = vmatprep.subr.mxu0 0.0
        %480 = vmatpush1.msra.mxu0 %v437
        %481 = vmatprep.subr.mxu0 0.0
        %482 = vmatpush1.msra.mxu0 %v438
        %483 = vmatprep.subr.mxu0 0.0
        %484 = vmatpush1.msra.mxu0 %v439
        %485 = vmatprep.subr.mxu0 0.0
        %486 = vmatpush1.msra.mxu0 %v440
        %487 = vmatprep.subr.mxu0 0.0
        %488 = vmatpush1.msra.mxu0 %v441
        %489 = vmatprep.subr.mxu0 0.0
        %490 = vmatpush1.msra.mxu0 %v442
        %491 = vmatprep.subr.mxu0 0.0
        %492 = vmatpush1.msra.mxu0 %v443
        %493 = vmatprep.subr.mxu0 0.0
        %494 = vmatpush1.msra.mxu0 %v444
        %495 = vmatprep.subr.mxu0 0.0
        %496 = vmatpush1.msra.mxu0 %v445
        %497 = vmatprep.subr.mxu0 0.0
        %498 = vmatpush1.msra.mxu0 %v446
        %499 = vmatprep.subr.mxu0 0.0
        %500 = vmatpush1.msra.mxu0 %v447
        %501 = vmatprep.subr.mxu0 0.0
        %502 = vmatpush1.msra.mxu0 %v448
        %503 = vmatprep.subr.mxu0 0.0
        %504 = vmatpush1.msra.mxu0 %v449
        %505 = vmatprep.subr.mxu0 0.0
        %506 = vmatpush1.msra.mxu0 %v450
        %507 = vmatprep.subr.mxu0 0.0
        %508 = vmatpush1.msra.mxu0 %v451
        %509 = vmatprep.subr.mxu0 0.0
        %510 = vmatpush1.msra.mxu0 %v452
        %511 = vmatprep.subr.mxu0 0.0
        %512 = vmatpush1.msra.mxu0 %v453
        %513 = vmatprep.subr.mxu0 0.0
        %514 = vmatpush1.msra.mxu0 %v454
        %515 = vmatprep.subr.mxu0 0.0
        %516 = vmatpush1.msra.mxu0 %v455
        %517 = vmatprep.subr.mxu0 0.0
        %518 = vmatpush1.msra.mxu0 %v456
        %519 = vmatprep.subr.mxu0 0.0
        %520 = vmatpush1.msra.mxu0 %v457
        %521 = vmatprep.subr.mxu0 0.0
        %522 = vmatpush1.msra.mxu0 %v458
        %523 = vmatprep.mubr.f32.mxu0 %v293
        %524 = vmatmul.mubr.f32.gmra.mrb[0].mxu0 %v292
        %v525 = vpop.f32.mrb[0].mxu0
        %v526 = vadd.f32 0.0, %v525
        %v527 = vpop.f32.mrb[0].mxu0
        %528 = vmatprep.mubr.f32.mxu0 %v295
        %529 = vmatmul.mubr.f32.gmra.mrb[0].mxu0 %v294
        %v530 = vpop.f32.mrb[0].mxu0
        %v531 = vadd.f32 0.0, %v530
        %v532 = vpop.f32.mrb[0].mxu0
        %533 = vmatprep.mubr.f32.mxu0 %v297
        %534 = vmatmul.mubr.f32.gmra.mrb[0].mxu0 %v296
        %v535 = vpop.f32.mrb[0].mxu0
        %v536 = vadd.f32 0.0, %v535
        %v537 = vpop.f32.mrb[0].mxu0
        %538 = vmatprep.mubr.f32.mxu0 %v299
        %539 = vmatmul.mubr.f32.gmra.mrb[0].mxu0 %v298
        %v540 = vpop.f32.mrb[0].mxu0
        %v541 = vadd.f32 0.0, %v540
        %v542 = vpop.f32.mrb[0].mxu0
        %543 = vdwg.mxu0
        %s544 = sadd.s32 %s23, 1
        %s545 = smul.u32 %s544, 4
        %p546 = scmp.lt.s32.totalorder %s545, 8
        %s547 = scalar_lea.vmem %s2, 512
        %v548 = vld [vmem:[%s547] sm:$0xff]
        %v549 = vld [vmem:[%s547 + $0x8] sm:$0xff]
        %v550 = vld [vmem:[%s547 + $0x10] sm:$0xff]
        %v551 = vld [vmem:[%s547 + $0x18] sm:$0xff]
        %v552 = vld [vmem:[%s547 + $0x20] sm:$0xff]
        %v553 = vld [vmem:[%s547 + $0x28] sm:$0xff]
        %v554 = vld [vmem:[%s547 + $0x30] sm:$0xff]
        %v555 = vld [vmem:[%s547 + $0x38] sm:$0xff]
        %v556 = vld [vmem:[%s547 + $0x40] sm:$0xff]
        %v557 = vld [vmem:[%s547 + $0x48] sm:$0xff]
        %v558 = vld [vmem:[%s547 + $0x50] sm:$0xff]
        %v559 = vld [vmem:[%s547 + $0x58] sm:$0xff]
        %v560 = vld [vmem:[%s547 + $0x60] sm:$0xff]
        %v561 = vld [vmem:[%s547 + $0x68] sm:$0xff]
        %v562 = vld [vmem:[%s547 + $0x70] sm:$0xff]
        %v563 = vld [vmem:[%s547 + $0x78] sm:$0xff]
        %v564 = vld [vmem:[%s547 + $0x80] sm:$0xff]
        %v565 = vld [vmem:[%s547 + $0x88] sm:$0xff]
        %v566 = vld [vmem:[%s547 + $0x90] sm:$0xff]
        %v567 = vld [vmem:[%s547 + $0x98] sm:$0xff]
        %v568 = vld [vmem:[%s547 + $0xa0] sm:$0xff]
        %v569 = vld [vmem:[%s547 + $0xa8] sm:$0xff]
        %v570 = vld [vmem:[%s547 + $0xb0] sm:$0xff]
        %v571 = vld [vmem:[%s547 + $0xb8] sm:$0xff]
        %v572 = vld [vmem:[%s547 + $0xc0] sm:$0xff]
        %v573 = vld [vmem:[%s547 + $0xc8] sm:$0xff]
        %v574 = vld [vmem:[%s547 + $0xd0] sm:$0xff]
        %v575 = vld [vmem:[%s547 + $0xd8] sm:$0xff]
        %v576 = vld [vmem:[%s547 + $0xe0] sm:$0xff]
        %v577 = vld [vmem:[%s547 + $0xe8] sm:$0xff]
        %v578 = vld [vmem:[%s547 + $0xf0] sm:$0xff]
        %v579 = vld [vmem:[%s547 + $0xf8] sm:$0xff]
        %580 = vmatprep.subr.mxu0 0.0
        %581 = vmatpush1.msra.mxu0 %v548
        %582 = vmatprep.subr.mxu0 0.0
        %583 = vmatpush1.msra.mxu0 %v549
        %584 = vmatprep.subr.mxu0 0.0
        %585 = vmatpush1.msra.mxu0 %v550
        %586 = vmatprep.subr.mxu0 0.0
        %587 = vmatpush1.msra.mxu0 %v551
        %588 = vmatprep.subr.mxu0 0.0
        %589 = vmatpush1.msra.mxu0 %v552
        %590 = vmatprep.subr.mxu0 0.0
        %591 = vmatpush1.msra.mxu0 %v553
        %592 = vmatprep.subr.mxu0 0.0
        %593 = vmatpush1.msra.mxu0 %v554
        %594 = vmatprep.subr.mxu0 0.0
        %595 = vmatpush1.msra.mxu0 %v555
        %596 = vmatprep.subr.mxu0 0.0
        %597 = vmatpush1.msra.mxu0 %v556
        %598 = vmatprep.subr.mxu0 0.0
        %599 = vmatpush1.msra.mxu0 %v557
        %600 = vmatprep.subr.mxu0 0.0
        %601 = vmatpush1.msra.mxu0 %v558
        %602 = vmatprep.subr.mxu0 0.0
        %603 = vmatpush1.msra.mxu0 %v559
        %604 = vmatprep.subr.mxu0 0.0
        %605 = vmatpush1.msra.mxu0 %v560
        %606 = vmatprep.subr.mxu0 0.0
        %607 = vmatpush1.msra.mxu0 %v561
        %608 = vmatprep.subr.mxu0 0.0
        %609 = vmatpush1.msra.mxu0 %v562
        %610 = vmatprep.subr.mxu0 0.0
        %611 = vmatpush1.msra.mxu0 %v563
        %612 = vmatprep.subr.mxu0 0.0
        %613 = vmatpush1.msra.mxu0 %v564
        %614 = vmatprep.subr.mxu0 0.0
        %615 = vmatpush1.msra.mxu0 %v565
        %616 = vmatprep.subr.mxu0 0.0
        %617 = vmatpush1.msra.mxu0 %v566
        %618 = vmatprep.subr.mxu0 0.0
        %619 = vmatpush1.msra.mxu0 %v567
        %620 = vmatprep.subr.mxu0 0.0
        %621 = vmatpush1.msra.mxu0 %v568
        %622 = vmatprep.subr.mxu0 0.0
        %623 = vmatpush1.msra.mxu0 %v569
        %624 = vmatprep.subr.mxu0 0.0
        %625 = vmatpush1.msra.mxu0 %v570
        %626 = vmatprep.subr.mxu0 0.0
        %627 = vmatpush1.msra.mxu0 %v571
        %628 = vmatprep.subr.mxu0 0.0
        %629 = vmatpush1.msra.mxu0 %v572
        %630 = vmatprep.subr.mxu0 0.0
        %631 = vmatpush1.msra.mxu0 %v573
        %632 = vmatprep.subr.mxu0 0.0
        %633 = vmatpush1.msra.mxu0 %v574
        %634 = vmatprep.subr.mxu0 0.0
        %635 = vmatpush1.msra.mxu0 %v575
        %636 = vmatprep.subr.mxu0 0.0
        %637 = vmatpush1.msra.mxu0 %v576
        %638 = vmatprep.subr.mxu0 0.0
        %639 = vmatpush1.msra.mxu0 %v577
        %640 = vmatprep.subr.mxu0 0.0
        %641 = vmatpush1.msra.mxu0 %v578
        %642 = vmatprep.subr.mxu0 0.0
        %643 = vmatpush1.msra.mxu0 %v579
        %644 = vmatprep.mubr.f32.mxu0 %v301
        %645 = vmatmul.mubr.f32.gmra.mrb[0].mxu0 %v300
        %v646 = vpop.f32.mrb[0].mxu0
        %v647 = vadd.f32 0.0, %v646
        %v648 = vpop.f32.mrb[0].mxu0
        %649 = vdwg.mxu0
        %s650 = scalar_lea.vmem %s2, 768
        %v651 = vld [vmem:[%s650] sm:$0xff]
        %v652 = vld [vmem:[%s650 + $0x8] sm:$0xff]
        %v653 = vld [vmem:[%s650 + $0x10] sm:$0xff]
        %v654 = vld [vmem:[%s650 + $0x18] sm:$0xff]
        %v655 = vld [vmem:[%s650 + $0x20] sm:$0xff]
        %v656 = vld [vmem:[%s650 + $0x28] sm:$0xff]
        %v657 = vld [vmem:[%s650 + $0x30] sm:$0xff]
        %v658 = vld [vmem:[%s650 + $0x38] sm:$0xff]
        %v659 = vld [vmem:[%s650 + $0x40] sm:$0xff]
        %v660 = vld [vmem:[%s650 + $0x48] sm:$0xff]
        %v661 = vld [vmem:[%s650 + $0x50] sm:$0xff]
        %v662 = vld [vmem:[%s650 + $0x58] sm:$0xff]
        %v663 = vld [vmem:[%s650 + $0x60] sm:$0xff]
        %v664 = vld [vmem:[%s650 + $0x68] sm:$0xff]
        %v665 = vld [vmem:[%s650 + $0x70] sm:$0xff]
        %v666 = vld [vmem:[%s650 + $0x78] sm:$0xff]
        %v667 = vld [vmem:[%s650 + $0x80] sm:$0xff]
        %v668 = vld [vmem:[%s650 + $0x88] sm:$0xff]
        %v669 = vld [vmem:[%s650 + $0x90] sm:$0xff]
        %v670 = vld [vmem:[%s650 + $0x98] sm:$0xff]
        %v671 = vld [vmem:[%s650 + $0xa0] sm:$0xff]
        %v672 = vld [vmem:[%s650 + $0xa8] sm:$0xff]
        %v673 = vld [vmem:[%s650 + $0xb0] sm:$0xff]
        %v674 = vld [vmem:[%s650 + $0xb8] sm:$0xff]
        %v675 = vld [vmem:[%s650 + $0xc0] sm:$0xff]
        %v676 = vld [vmem:[%s650 + $0xc8] sm:$0xff]
        %v677 = vld [vmem:[%s650 + $0xd0] sm:$0xff]
        %v678 = vld [vmem:[%s650 + $0xd8] sm:$0xff]
        %v679 = vld [vmem:[%s650 + $0xe0] sm:$0xff]
        %v680 = vld [vmem:[%s650 + $0xe8] sm:$0xff]
        %v681 = vld [vmem:[%s650 + $0xf0] sm:$0xff]
        %v682 = vld [vmem:[%s650 + $0xf8] sm:$0xff]
        %683 = vmatprep.subr.mxu0 0.0
        %684 = vmatpush1.msra.mxu0 %v651
        %685 = vmatprep.subr.mxu0 0.0
        %686 = vmatpush1.msra.mxu0 %v652
        %687 = vmatprep.subr.mxu0 0.0
        %688 = vmatpush1.msra.mxu0 %v653
        %689 = vmatprep.subr.mxu0 0.0
        %690 = vmatpush1.msra.mxu0 %v654
        %691 = vmatprep.subr.mxu0 0.0
        %692 = vmatpush1.msra.mxu0 %v655
        %693 = vmatprep.subr.mxu0 0.0
        %694 = vmatpush1.msra.mxu0 %v656
        %695 = vmatprep.subr.mxu0 0.0
        %696 = vmatpush1.msra.mxu0 %v657
        %697 = vmatprep.subr.mxu0 0.0
        %698 = vmatpush1.msra.mxu0 %v658
        %699 = vmatprep.subr.mxu0 0.0
        %700 = vmatpush1.msra.mxu0 %v659
        %701 = vmatprep.subr.mxu0 0.0
        %702 = vmatpush1.msra.mxu0 %v660
        %703 = vmatprep.subr.mxu0 0.0
        %704 = vmatpush1.msra.mxu0 %v661
        %705 = vmatprep.subr.mxu0 0.0
        %706 = vmatpush1.msra.mxu0 %v662
        %707 = vmatprep.subr.mxu0 0.0
        %708 = vmatpush1.msra.mxu0 %v663
        %709 = vmatprep.subr.mxu0 0.0
        %710 = vmatpush1.msra.mxu0 %v664
        %711 = vmatprep.subr.mxu0 0.0
        %712 = vmatpush1.msra.mxu0 %v665
        %713 = vmatprep.subr.mxu0 0.0
        %714 = vmatpush1.msra.mxu0 %v666
        %715 = vmatprep.subr.mxu0 0.0
        %716 = vmatpush1.msra.mxu0 %v667
        %717 = vmatprep.subr.mxu0 0.0
        %718 = vmatpush1.msra.mxu0 %v668
        %719 = vmatprep.subr.mxu0 0.0
        %720 = vmatpush1.msra.mxu0 %v669
        %721 = vmatprep.subr.mxu0 0.0
        %722 = vmatpush1.msra.mxu0 %v670
        %723 = vmatprep.subr.mxu0 0.0
        %724 = vmatpush1.msra.mxu0 %v671
        %725 = vmatprep.subr.mxu0 0.0
        %726 = vmatpush1.msra.mxu0 %v672
        %727 = vmatprep.subr.mxu0 0.0
        %728 = vmatpush1.msra.mxu0 %v673
        %729 = vmatprep.subr.mxu0 0.0
        %730 = vmatpush1.msra.mxu0 %v674
        %731 = vmatprep.subr.mxu0 0.0
        %732 = vmatpush1.msra.mxu0 %v675
        %733 = vmatprep.subr.mxu0 0.0
        %734 = vmatpush1.msra.mxu0 %v676
        %735 = vmatprep.subr.mxu0 0.0
        %736 = vmatpush1.msra.mxu0 %v677
        %737 = vmatprep.subr.mxu0 0.0
        %738 = vmatpush1.msra.mxu0 %v678
        %739 = vmatprep.subr.mxu0 0.0
        %740 = vmatpush1.msra.mxu0 %v679
        %741 = vmatprep.subr.mxu0 0.0
        %742 = vmatpush1.msra.mxu0 %v680
        %743 = vmatprep.subr.mxu0 0.0
        %744 = vmatpush1.msra.mxu0 %v681
        %745 = vmatprep.subr.mxu0 0.0
        %746 = vmatpush1.msra.mxu0 %v682
        %747 = vmatprep.mubr.f32.mxu0 %v301
        %748 = vmatmul.mubr.f32.gmra.mrb[0].mxu0 %v300
        %v749 = vpop.f32.mrb[0].mxu0
        %v750 = vadd.f32 0.0, %v749
        %v751 = vpop.f32.mrb[0].mxu0
        %752 = vdwg.mxu0
        %s753 = scalar_select %p546, 1, 0
        %v754 = vstv %s753
        %vm755 = vcmp.eq.s32.totalorder %v754, 1
        %v756 = vsel %vm755, %v647, 0.0
        %v757 = vsel %vm755, %v750, 0.0
        %758 = vmatprep.subr.mxu0 0.0
        %759 = vmatpush1.msra.mxu0 %v548
        %760 = vmatprep.subr.mxu0 0.0
        %761 = vmatpush1.msra.mxu0 %v549
        %762 = vmatprep.subr.mxu0 0.0
        %763 = vmatpush1.msra.mxu0 %v550
        %764 = vmatprep.subr.mxu0 0.0
        %765 = vmatpush1.msra.mxu0 %v551
        %766 = vmatprep.subr.mxu0 0.0
        %767 = vmatpush1.msra.mxu0 %v552
        %768 = vmatprep.subr.mxu0 0.0
        %769 = vmatpush1.msra.mxu0 %v553
        %770 = vmatprep.subr.mxu0 0.0
        %771 = vmatpush1.msra.mxu0 %v554
        %772 = vmatprep.subr.mxu0 0.0
        %773 = vmatpush1.msra.mxu0 %v555
        %774 = vmatprep.subr.mxu0 0.0
        %775 = vmatpush1.msra.mxu0 %v556
        %776 = vmatprep.subr.mxu0 0.0
        %777 = vmatpush1.msra.mxu0 %v557
        %778 = vmatprep.subr.mxu0 0.0
        %779 = vmatpush1.msra.mxu0 %v558
        %780 = vmatprep.subr.mxu0 0.0
        %781 = vmatpush1.msra.mxu0 %v559
        %782 = vmatprep.subr.mxu0 0.0
        %783 = vmatpush1.msra.mxu0 %v560
        %784 = vmatprep.subr.mxu0 0.0
        %785 = vmatpush1.msra.mxu0 %v561
        %786 = vmatprep.subr.mxu0 0.0
        %787 = vmatpush1.msra.mxu0 %v562
        %788 = vmatprep.subr.mxu0 0.0
        %789 = vmatpush1.msra.mxu0 %v563
        %790 = vmatprep.subr.mxu0 0.0
        %791 = vmatpush1.msra.mxu0 %v564
        %792 = vmatprep.subr.mxu0 0.0
        %793 = vmatpush1.msra.mxu0 %v565
        %794 = vmatprep.subr.mxu0 0.0
        %795 = vmatpush1.msra.mxu0 %v566
        %796 = vmatprep.subr.mxu0 0.0
        %797 = vmatpush1.msra.mxu0 %v567
        %798 = vmatprep.subr.mxu0 0.0
        %799 = vmatpush1.msra.mxu0 %v568
        %800 = vmatprep.subr.mxu0 0.0
        %801 = vmatpush1.msra.mxu0 %v569
        %802 = vmatprep.subr.mxu0 0.0
        %803 = vmatpush1.msra.mxu0 %v570
        %804 = vmatprep.subr.mxu0 0.0
        %805 = vmatpush1.msra.mxu0 %v571
        %806 = vmatprep.subr.mxu0 0.0
        %807 = vmatpush1.msra.mxu0 %v572
        %808 = vmatprep.subr.mxu0 0.0
        %809 = vmatpush1.msra.mxu0 %v573
        %810 = vmatprep.subr.mxu0 0.0
        %811 = vmatpush1.msra.mxu0 %v574
        %812 = vmatprep.subr.mxu0 0.0
        %813 = vmatpush1.msra.mxu0 %v575
        %814 = vmatprep.subr.mxu0 0.0
        %815 = vmatpush1.msra.mxu0 %v576
        %816 = vmatprep.subr.mxu0 0.0
        %817 = vmatpush1.msra.mxu0 %v577
        %818 = vmatprep.subr.mxu0 0.0
        %819 = vmatpush1.msra.mxu0 %v578
        %820 = vmatprep.subr.mxu0 0.0
        %821 = vmatpush1.msra.mxu0 %v579
        %822 = vmatprep.mubr.f32.mxu0 %v293
        %823 = vmatmul.mubr.f32.gmra.mrb[0].mxu0 %v292
        %v824 = vpop.f32.mrb[0].mxu0
        %v825 = vpop.f32.mrb[0].mxu0
        %826 = vmatprep.mubr.f32.mxu0 %v295
        %827 = vmatmul.mubr.f32.gmra.mrb[0].mxu0 %v294
        %v828 = vpop.f32.mrb[0].mxu0
        %v829 = vadd.f32 0.0, %v828
        %v830 = vpop.f32.mrb[0].mxu0
        %831 = vmatprep.mubr.f32.mxu0 %v297
        %832 = vmatmul.mubr.f32.gmra.mrb[0].mxu0 %v296
        %v833 = vpop.f32.mrb[0].mxu0
        %v834 = vadd.f32 0.0, %v833
        %v835 = vpop.f32.mrb[0].mxu0
        %836 = vmatprep.mubr.f32.mxu0 %v299
        %837 = vmatmul.mubr.f32.gmra.mrb[0].mxu0 %v298
        %v838 = vpop.f32.mrb[0].mxu0
        %v839 = vadd.f32 0.0, %v838
        %v840 = vpop.f32.mrb[0].mxu0
        %841 = vdwg.mxu0
        %842 = vmatprep.subr.mxu0 0.0
        %843 = vmatpush1.msra.mxu0 %v651
        %844 = vmatprep.subr.mxu0 0.0
        %845 = vmatpush1.msra.mxu0 %v652
        %846 = vmatprep.subr.mxu0 0.0
        %847 = vmatpush1.msra.mxu0 %v653
        %848 = vmatprep.subr.mxu0 0.0
        %849 = vmatpush1.msra.mxu0 %v654
        %850 = vmatprep.subr.mxu0 0.0
        %851 = vmatpush1.msra.mxu0 %v655
        %852 = vmatprep.subr.mxu0 0.0
        %853 = vmatpush1.msra.mxu0 %v656
        %854 = vmatprep.subr.mxu0 0.0
        %855 = vmatpush1.msra.mxu0 %v657
        %856 = vmatprep.subr.mxu0 0.0
        %857 = vmatpush1.msra.mxu0 %v658
        %858 = vmatprep.subr.mxu0 0.0
        %859 = vmatpush1.msra.mxu0 %v659
        %860 = vmatprep.subr.mxu0 0.0
        %861 = vmatpush1.msra.mxu0 %v660
        %862 = vmatprep.subr.mxu0 0.0
        %863 = vmatpush1.msra.mxu0 %v661
        %864 = vmatprep.subr.mxu0 0.0
        %865 = vmatpush1.msra.mxu0 %v662
        %866 = vmatprep.subr.mxu0 0.0
        %867 = vmatpush1.msra.mxu0 %v663
        %868 = vmatprep.subr.mxu0 0.0
        %869 = vmatpush1.msra.mxu0 %v664
        %870 = vmatprep.subr.mxu0 0.0
        %871 = vmatpush1.msra.mxu0 %v665
        %872 = vmatprep.subr.mxu0 0.0
        %873 = vmatpush1.msra.mxu0 %v666
        %874 = vmatprep.subr.mxu0 0.0
        %875 = vmatpush1.msra.mxu0 %v667
        %876 = vmatprep.subr.mxu0 0.0
        %877 = vmatpush1.msra.mxu0 %v668
        %878 = vmatprep.subr.mxu0 0.0
        %879 = vmatpush1.msra.mxu0 %v669
        %880 = vmatprep.subr.mxu0 0.0
        %881 = vmatpush1.msra.mxu0 %v670
        %882 = vmatprep.subr.mxu0 0.0
        %883 = vmatpush1.msra.mxu0 %v671
        %884 = vmatprep.subr.mxu0 0.0
        %885 = vmatpush1.msra.mxu0 %v672
        %886 = vmatprep.subr.mxu0 0.0
        %887 = vmatpush1.msra.mxu0 %v673
        %888 = vmatprep.subr.mxu0 0.0
        %889 = vmatpush1.msra.mxu0 %v674
        %890 = vmatprep.subr.mxu0 0.0
        %891 = vmatpush1.msra.mxu0 %v675
        %892 = vmatprep.subr.mxu0 0.0
        %893 = vmatpush1.msra.mxu0 %v676
        %894 = vmatprep.subr.mxu0 0.0
        %895 = vmatpush1.msra.mxu0 %v677
        %896 = vmatprep.subr.mxu0 0.0
        %897 = vmatpush1.msra.mxu0 %v678
        %898 = vmatprep.subr.mxu0 0.0
        %899 = vmatpush1.msra.mxu0 %v679
        %900 = vmatprep.subr.mxu0 0.0
        %901 = vmatpush1.msra.mxu0 %v680
        %902 = vmatprep.subr.mxu0 0.0
        %903 = vmatpush1.msra.mxu0 %v681
        %904 = vmatprep.subr.mxu0 0.0
        %905 = vmatpush1.msra.mxu0 %v682
        %906 = vmatprep.mubr.f32.mxu0 %v293
        %907 = vmatmul.mubr.f32.gmra.mrb[0].mxu0 %v292
        %v908 = vpop.f32.mrb[0].mxu0
        %v909 = vpop.f32.mrb[0].mxu0
        %910 = vmatprep.mubr.f32.mxu0 %v295
        %911 = vmatmul.mubr.f32.gmra.mrb[0].mxu0 %v294
        %v912 = vpop.f32.mrb[0].mxu0
        %v913 = vadd.f32 0.0, %v912
        %v914 = vpop.f32.mrb[0].mxu0
        %915 = vmatprep.mubr.f32.mxu0 %v297
        %916 = vmatmul.mubr.f32.gmra.mrb[0].mxu0 %v296
        %v917 = vpop.f32.mrb[0].mxu0
        %v918 = vadd.f32 0.0, %v917
        %v919 = vpop.f32.mrb[0].mxu0
        %920 = vmatprep.mubr.f32.mxu0 %v299
        %921 = vmatmul.mubr.f32.gmra.mrb[0].mxu0 %v298
        %v922 = vpop.f32.mrb[0].mxu0
        %v923 = vadd.f32 0.0, %v922
        %v924 = vpop.f32.mrb[0].mxu0
        %925 = vdwg.mxu0
        %v926 = vadd.f32 %v526, %v913
        %v927 = vadd.f32 %v531, %v918
        %v928 = vadd.f32 %v536, %v923
        %v929 = vadd.f32 %v541, %v757
        %v934 = vrot.slane %v926, 1
        %v935 = vrot.slane %v927, 1
        %v936 = vrot.slane %v928, 1
        %v937 = vrot.slane %v929, 1
        %vm942 = vcmask 1046528
        %v943 = vsel %vm942, %v934, 0.0
        %v944 = vsel %vm942, %v935, 0.0
        %v945 = vsel %vm942, %v936, 0.0
        %v946 = vsel %vm942, %v937, 0.0
        %v947 = vadd.f32 %v408, %v829
        %v948 = vadd.f32 %v413, %v834
        %v949 = vadd.f32 %v418, %v839
        %v950 = vadd.f32 %v423, %v756
        %v951 = vadd.f32 %v947, %v943
        %v952 = vadd.f32 %v948, %v944
        %v953 = vadd.f32 %v949, %v945
        %v954 = vadd.f32 %v950, %v946
        %vm955 = vcmask 523264
        %956 = vst.msk [vmem:[%s262] sm:$0xff] %vm955, %v951
        %957 = vst.msk [vmem:[%s262 + $0x8] sm:$0xff] %vm955, %v952
        %958 = vst.msk [vmem:[%s262 + $0x10] sm:$0xff] %vm955, %v953
        %959 = vst.msk [vmem:[%s262 + $0x18] sm:$0xff] %vm955, %v954
        %s960 = sand.u32 %s146, 1
        %s961 = scalar_lea.sflag [#allocation3], %s960
        %s962 = sand.u32 %s146, 1
        %s963 = smul.addr %s962, 32
        %s964 = scalar_lea.vmem [#allocation2], %s963
        // Predicated region
        $region37: #{_lambda_.1} parent=35 // pred_check
          %p965 = pneg %p156
        $region38: #{_lambda_.1} parent=35 // pred_check_branch
          %967 = sbr.rel (%p965) target = $region40
        $region39: #{_lambda_.1} parent=35 // pred_region
          %s968 = smul.u32 4, %s23
          %s970 = ssub.s32 512, 512
          %971 = vsyncadd %s961, %s970
          %s972 = smul.addr %s22, 8
          %s973 = sadd.s32 %s968, %s972
          %s974 = smul.addr %s973, 128
          %s975 = scalar_lea.hbm %s4, %s974
          %s976 = sshll.u32 %s964, 4
          %s977 = int_to_ptr.vmem [resolvable:$true] %s976
          %982 = dma.vmem_to_hbm [thread:$0]  %s977, 512, %s975, %s961, 128, 128, 8
        $region40: #{_lambda_.1} parent=35 // pred_fallthru
          _
      $region36: #{_lambda_.1} parent=5 // pred_fallthru
        _
      %p983 = scmp.le.s32.totalorder 2, %s13
      // Predicated region
      $region41: #{_lambda_.1} parent=5 // pred_check
        %p984 = pneg %p983
      $region42: #{_lambda_.1} parent=5 // pred_check_branch
        %986 = sbr.rel (%p984) target = $region44
      $region43: #{_lambda_.1} parent=5 // pred_region
        %s987 = ssub.s32 %s13, 2
        // Predicated region
        $region45: #{_lambda_.1} parent=43 // pred_check
          %p988 = pneg %p162
        $region46: #{_lambda_.1} parent=43 // pred_check_branch
          %990 = sbr.rel (%p988) target = $region48
        $region47: #{_lambda_.1} parent=43 // pred_region
          %s991 = sand.u32 %s147, 1
          %s992 = scalar_lea.sflag [#allocation3], %s991
          %s993 = sand.u32 %s147, 1
          %s994 = smul.addr %s993, 32
          %s995 = scalar_lea.vmem [#allocation2], %s994
          %996 = dma.done %s992, 512
        $region48: #{_lambda_.1} parent=43 // pred_fallthru
          _
      $region44: #{_lambda_.1} parent=5 // pred_fallthru
        _
    $region6: #{_lambda_.1} parent=1 // loop_footer
      %s17 = sadd.s32 1, %s13
    $region7: #{_lambda_.1} parent=1 // loop_footer_branch
      %12 = sbr.rel target = $region3
    $region8: #{_lambda_.1} parent=1 // loop_exit
      _
    %997 = vsyncpa [#allocation3], 1
    %s998 = scalar_lea.sflag [#allocation3], 1
    %999 = vsyncpa %s998, 1

</llo_original>
